<compile_context>
chip_gen: v7x
topology: tpu7x:2x2x1
jax: 0.10.0
libtpu: 0.0.40
codegen_flags: <defaults>
</compile_context>

<pallas_src>
import functools
import math

import jax
import jax.numpy as jnp
from jax.experimental import pallas as pl
from jax.experimental.pallas import tpu as pltpu


# --------------------------------------------------------------------------
# Kernel
# --------------------------------------------------------------------------
def _upsample_kernel(p_ref, g_ref, o_ref, *, mode, k, n, p_cols):
    """One row-block of the upsampler.

    p_ref: (rb, N)      original points, x/y/z rows folded into the row dim.
    g_ref: (k, rb, P)   k nearest neighbours, same folded layout.
    o_ref: (rb, N + P)  full output slab: [ original | upsampled ].
    """
    # Copy-through of the original cloud (replaces the wrapper-level concat).
    o_ref[:, pl.ds(0, n)] = p_ref[...].astype(o_ref.dtype)

    if mode == "uniform":
        acc = g_ref[0].astype(jnp.float32)
        for j in range(1, k):
            acc = acc + g_ref[j].astype(jnp.float32)
        o_ref[:, pl.ds(n, p_cols)] = (acc * jnp.float32(1.0 / k)).astype(o_ref.dtype)
        return

    # ------------------------------ weighted ------------------------------
    anchor = g_ref[0].astype(jnp.float32)
    if k == 1:
        o_ref[:, pl.ds(n, p_cols)] = anchor.astype(o_ref.dtype)
        return

    rb = o_ref.shape[0]
    # Block-diagonal (rb, rb) 0/1 matrix with 3x3 blocks of ones.  One matmul
    # both (a) sums the squared deltas over the x/y/z rows of each point and
    # (b) broadcasts the sum back to those 3 rows, so the channel reduction
    # lives on the otherwise-idle MXU and the elementwise path stays dense.
    r = jax.lax.broadcasted_iota(jnp.int32, (rb, rb), 0) // 3
    c = jax.lax.broadcasted_iota(jnp.int32, (rb, rb), 1) // 3
    gsum = (r == c).astype(jnp.bfloat16)

    def group_sum(x):
        # Split-bf16 matmul: gsum is exact 0/1 in bf16, the hi/lo split keeps
        # ~f32 accuracy with plain bf16 MXU passes and f32 accumulation.
        hi = x.astype(jnp.bfloat16)
        lo = (x - hi.astype(jnp.float32)).astype(jnp.bfloat16)
        return (jnp.dot(gsum, hi, preferred_element_type=jnp.float32)
                + jnp.dot(gsum, lo, preferred_element_type=jnp.float32))

    # Deltas are computed once and reused for both the distance and the update.
    deltas = [g_ref[j].astype(jnp.float32) - anchor for j in range(1, k)]
    dists = [group_sum(d * d) for d in deltas]

    if k == 2:
        # softmax over logits {0, -dist} collapses to a sigmoid (one EUP exp).
        w = jax.nn.sigmoid(-dists[0])
        o_ref[:, pl.ds(n, p_cols)] = (anchor + deltas[0] * w).astype(o_ref.dtype)
        return

    # General k: dist_0 == 0, so the max logit is 0 and exp() never overflows.
    es = [jnp.exp(-d) for d in dists]
    denom = es[0] + 1.0
    for e in es[1:]:
        denom = denom + e
    inv = 1.0 / denom                 # exact divide (approx reciprocal costs ~1e-4)
    acc = anchor
    for j in range(1, k):
        acc = acc + (anchor + deltas[j - 1]) * es[j - 1]
    o_ref[:, pl.ds(n, p_cols)] = (acc * inv).astype(o_ref.dtype)


# --------------------------------------------------------------------------
# Tiling helpers
# --------------------------------------------------------------------------
def _vmem_capacity_bytes():
    """Per-core VMEM capacity (v7x: 64 MiB, v5e/v6e: 128 MiB)."""
    try:
        info = pltpu.get_tpu_info()
        cap = int(getattr(info, "vmem_capacity_bytes", 0) or 0)
        if cap > 0:
            return cap
    except Exception:
        pass
    return 64 << 20  # conservative (v7x-sized) default


def _pick_row_block(rows, group, per_row_bytes, budget_bytes):
    """Rows (= 3 * batch elements) per grid step.

    Blocks must be a multiple of lcm(8, group) (dense sublanes + whole xyz
    groups for the weighted reduction) and divide `rows` exactly; otherwise the
    full row dim is used (always a legal block).  Among candidates under the
    double-buffered VMEM budget we prefer >=2 grid steps with an even step
    count (v7x's two TensorCores share the parallel axis), then the largest
    block (amortizes the ~0.35 us per-grid-step overhead).
    """
    req = 8 * group // math.gcd(8, group)
    divisors = [d for d in range(req, rows + 1, req) if rows % d == 0]
    if not divisors:
        return rows
    fitting = [d for d in divisors if d * per_row_bytes <= budget_bytes]
    if not fitting:
        return divisors[0]
    multi = [d for d in fitting if rows // d >= 2]
    if not multi:
        return max(fitting)
    even = [d for d in multi if (rows // d) % 2 == 0]
    return max(even) if even else max(multi)


def _pad128(x):
    return ((x + 127) // 128) * 128


# --------------------------------------------------------------------------
# Wrapper
# --------------------------------------------------------------------------
def vanilla_upsampler(p, patches, mode="uniform", k=2):
    """Matches VanillaUpsampler(mode, k).forward(p, patches).

    p:       [B, 3, N]
    patches: [B, 3, P, K_in] with K_in >= k
    returns: [B, 3, N + P] == concat(p, new_points)
    """
    if mode not in ("uniform", "weighted"):
        raise ValueError(f"unknown upsampling mode: {mode}")
    B, C, N = p.shape
    assert C == 3, "point clouds are [B, 3, N]"
    Bp, Cp, P, K_in = patches.shape
    assert Bp == B and Cp == 3 and K_in >= k >= 1

    rows = 3 * B
    out_dtype = jnp.result_type(p.dtype, patches.dtype)

    # [B,3,P,K] -> [k,B,3,P] -> [k, 3B, P].  The transpose is the one remaining
    # wrapper-side HBM pass; the reshapes here (and on p / the output below)
    # are free, layout-compatible views.
    # TODO(synk): have the upstream grouping op emit patches already in a
    # neighbour-major [k, B, 3, P] layout so this materialized transpose
    # disappears (reading the K_in-last layout in-kernel is lane-sparse and
    # only pays off for K_in >= ~32).
    grouped = patches if k == K_in else patches[:, :, :, :k]
    g = jnp.transpose(grouped, (3, 0, 1, 2)).reshape(k, rows, P)
    p2 = p.reshape(rows, N)

    g_item = jnp.dtype(g.dtype).itemsize
    p_item = jnp.dtype(p.dtype).itemsize
    o_item = jnp.dtype(out_dtype).itemsize

    # Double-buffered per-row VMEM footprint, per-operand dtypes, lane-padded.
    per_row_bytes = 2 * (k * _pad128(P) * g_item
                         + _pad128(N) * p_item
                         + _pad128(N + P) * o_item)

    vmem_cap = _vmem_capacity_bytes()
    block_budget = (vmem_cap * 3) // 8          # ~24 MiB on v7x, ~48 MiB on v5e/v6e
    group = 3 if mode == "weighted" else 1
    rb = _pick_row_block(rows, group, per_row_bytes, block_budget)
    grid = (rows // rb,)

    vmem_limit = int(min(vmem_cap,
                         max((vmem_cap * 3) // 4, rb * per_row_bytes + (8 << 20))))

    elementwise_flops = (2 * k) if mode == "uniform" else (10 * (k - 1) + 4)
    cost = pl.CostEstimate(
        flops=rows * P * elementwise_flops,
        transcendentals=(rows * P * (k - 1)) if mode == "weighted" else 0,
        bytes_accessed=(k * rows * P * g_item
                        + rows * N * p_item
                        + rows * (N + P) * o_item),
    )

    out2 = pl.pallas_call(
        functools.partial(_upsample_kernel, mode=mode, k=k, n=N, p_cols=P),
        out_shape=jax.ShapeDtypeStruct((rows, N + P), out_dtype),
        grid=grid,
        in_specs=[
            pl.BlockSpec((rb, N), lambda r: (r, 0)),          # original points
            pl.BlockSpec((k, rb, P), lambda r: (0, r, 0)),    # grouped neighbours
        ],
        out_specs=pl.BlockSpec((rb, N + P), lambda r: (r, 0)),
        compiler_params=pltpu.CompilerParams(
            dimension_semantics=("parallel",),
            vmem_limit_bytes=vmem_limit,
        ),
        cost_estimate=cost,
    )(p2, g)

    return out2.reshape(B, 3, N + P)


# --------------------------------------------------------------------------
# Pure-JAX reference mirroring the PyTorch forward
# --------------------------------------------------------------------------
def _reference(p, patches, mode="uniform", k=2):
    grouped = patches[:, :, :, :k]                        # [B, 3, P, k]
    if mode == "uniform":
        new_points = jnp.mean(grouped, axis=-1)
    elif mode == "weighted":
        deltas = grouped - grouped[:, :, :, 0][..., None]
        dist = jnp.sum(deltas ** 2, axis=1, keepdims=True)
        weights = jax.nn.softmax(-dist, axis=3)
        new_points = jnp.sum(grouped * weights, axis=3)
    else:
        raise ValueError(mode)
    return jnp.concatenate((p, new_points), axis=2)


if __name__ == "__main__":
    key = jax.random.PRNGKey(0)
    kp, kpatch = jax.random.split(key)

    B, N, P, K_in = 8, 256, 256, 4
    p = jax.random.normal(kp, (B, 3, N), dtype=jnp.float32)
    patches = jax.random.normal(kpatch, (B, 3, P, K_in), dtype=jnp.float32)

    ok = True
    for mode, k in (("uniform", 2), ("weighted", 2), ("uniform", 3), ("weighted", 3)):
        out = jax.block_until_ready(vanilla_upsampler(p, patches, mode=mode, k=k))
        ref = _reference(p, patches, mode=mode, k=k)
        if out.shape != (B, 3, N + P):
            ok = False
        if not jnp.allclose(out, ref, atol=2e-5, rtol=2e-5):
            ok = False

    if ok:
        print("KERNEL_OK")
</pallas_src>

<mosaic_0001>
module attributes {stable_mosaic.version = 11 : i64} {
  func.func @_upsample_kernel(%arg0: i32, %arg1: memref<8x256xf32, #tpu.memory_space<vmem>>, %arg2: memref<2x8x256xf32, #tpu.memory_space<vmem>>, %arg3: memref<8x512xf32, #tpu.memory_space<vmem>>) attributes {dimension_semantics = [#tpu.dimension_semantics<parallel>], iteration_bounds = array<i64: 3>, scalar_prefetch = 0 : i64, scratch_operands = 0 : i64, tpu.core_type = #tpu.core_type<tc>, window_params = [{transform_indices = @transform_0, window_bounds = array<i64: 8, 256>}, {transform_indices = @transform_1, window_bounds = array<i64: 2, 8, 256>}, {transform_indices = @transform_2, window_bounds = array<i64: 8, 512>}]} {
    %c0 = arith.constant 0 : index
    %c0_0 = arith.constant 0 : index
    %0 = vector.load %arg1[%c0, %c0_0] : memref<8x256xf32, #tpu.memory_space<vmem>>, vector<8x256xf32>
    %c0_1 = arith.constant 0 : index
    %c0_2 = arith.constant 0 : index
    %1 = vector.load %arg3[%c0_1, %c0_2] : memref<8x512xf32, #tpu.memory_space<vmem>>, vector<8x256xf32>
    tpu.vector_store %arg3[%c0_1, %c0_2], %0 {strides = array<i32>} : memref<8x512xf32, #tpu.memory_space<vmem>>, vector<8x256xf32>,
    %c0_3 = arith.constant 0 : index
    %c0_4 = arith.constant 0 : index
    %c0_5 = arith.constant 0 : index
    %2 = vector.load %arg2[%c0_3, %c0_4, %c0_5] : memref<2x8x256xf32, #tpu.memory_space<vmem>>, vector<1x8x256xf32>
    %3 = vector.shape_cast %2 : vector<1x8x256xf32> to vector<8x256xf32>
    %c1 = arith.constant 1 : index
    %c0_6 = arith.constant 0 : index
    %c0_7 = arith.constant 0 : index
    %4 = vector.load %arg2[%c1, %c0_6, %c0_7] : memref<2x8x256xf32, #tpu.memory_space<vmem>>, vector<1x8x256xf32>
    %5 = vector.shape_cast %4 : vector<1x8x256xf32> to vector<8x256xf32>
    %6 = arith.addf %3, %5 : vector<8x256xf32>
    %cst = arith.constant 5.000000e-01 : f32
    %7 = vector.broadcast %cst : f32 to vector<8x256xf32>
    %8 = arith.mulf %6, %7 : vector<8x256xf32>
    %c0_8 = arith.constant 0 : index
    %c256 = arith.constant 256 : index
    %9 = vector.load %arg3[%c0_8, %c256] : memref<8x512xf32, #tpu.memory_space<vmem>>, vector<8x256xf32>
    tpu.vector_store %arg3[%c0_8, %c256], %8 {strides = array<i32>} : memref<8x512xf32, #tpu.memory_space<vmem>>, vector<8x256xf32>,
    return
  }
  func.func @transform_0(%arg0: i32) -> (i32, i32) {
    %c0_i32 = arith.constant 0 : i32
    %c0_i32_0 = arith.constant 0 : i32
    return %arg0, %c0_i32 : i32, i32
  }
  func.func @transform_1(%arg0: i32) -> (i32, i32, i32) {
    %c0_i32 = arith.constant 0 : i32
    %c0_i32_0 = arith.constant 0 : i32
    %c0_i32_1 = arith.constant 0 : i32
    return %c0_i32, %arg0, %c0_i32_0 : i32, i32, i32
  }
  func.func @transform_2(%arg0: i32) -> (i32, i32) {
    %c0_i32 = arith.constant 0 : i32
    %c0_i32_0 = arith.constant 0 : i32
    return %arg0, %c0_i32 : i32, i32
  }
}

</mosaic_0001>

<llo_original>
// kernel: tpu_custom_call.1
$region0: #{tpu_custom_call.1}
  #allocation0 [shape = 'u32[]', space=smem, size = 0x4, offset = 0x4, fixed_abs, tag = 'smem constant byte address 0x4 - core index']
  #allocation1 [shape = 'u32[144,128]{1,0:T(1,128)}', space=vmem, size = 0x12000, scoped, tag = 'internal scratch']
  %s0 = inlined_call_operand.hbm [shape: f32[24,256], index: 0, kind: input, shape index: {}]
  %s1 = inlined_call_operand.hbm [shape: f32[2,24,256], index: 1, kind: input, shape index: {}]
  %s2 = inlined_call_operand.hbm [shape: f32[24,512], index: 2, kind: output, shape index: {}]
  %s3 = sld [smem:[#allocation0]]
  $region49: #{tpu_custom_call.1} parent=0
    _
  %s5 = ssub.s32 1, %s3
  %s6 = scalar_select 0, %s5, %s3
  $region1: #{tpu_custom_call.1} parent=0
    #allocation2 [shape = 'u8[16384]{0}', space=vmem, size = 0x4000, scoped, tag = 'input window, operand 0']
    #allocation3 [shape = 's32[2]{0}', space=sflag, size = 0x8, scoped, tag = 'scoped memory for tpu_custom_call.1']
    #allocation4 [shape = 's32[2]{0}', space=sflag, size = 0x8, scoped, tag = 'scoped memory for tpu_custom_call.1']
    #allocation5 [shape = 'u8[32768]{0}', space=vmem, size = 0x8000, scoped, tag = 'input window, operand 1']
    #allocation6 [shape = 's32[2]{0}', space=sflag, size = 0x8, scoped, tag = 'scoped memory for tpu_custom_call.1']
    #allocation7 [shape = 'u8[32768]{0}', space=vmem, size = 0x8000, scoped, tag = 'output window, operand 0']
    %7 = vsyncpa [#allocation3], 0
    %s8 = scalar_lea.sflag [#allocation3], 1
    %9 = vsyncpa %s8, 0
    %10 = vsyncpa [#allocation6], 0
    %s11 = scalar_lea.sflag [#allocation6], 1
    %12 = vsyncpa %s11, 0
    %13 = vsyncpa [#allocation4], 0
    %s14 = scalar_lea.sflag [#allocation4], 1
    %15 = vsyncpa %s14, 0
    loop: start=0, step=1, limit=5
    $region2: #{tpu_custom_call.1} parent=1 // loop_pre_header
      _
    $region3: #{tpu_custom_call.1} parent=1 // loop_header
      %s17 = sphi 0, %s21
      %p18 = scmp.ge.s32.totalorder %s17, 5
      %s27 = sphi 0, %s29
      %s30 = sphi 0, %s27
      %s31 = sphi 0, %s30
      %s47 = sphi 0, %s31
      %s53 = sphi 0, %s55
      %s56 = sphi 0, %s53
      %s57 = sphi 0, %s56
      %s73 = sphi 0, %s57
      %s79 = sphi 0, %s81
      %s82 = sphi 0, %s79
      %s83 = sphi 0, %s82
      %s99 = sphi 0, %s83
    $region4: #{tpu_custom_call.1} parent=1 // loop_header_branch
      %20 = sbr.rel (%p18) target = $region8
    $region5: #{tpu_custom_call.1} parent=1 // loop_body
      %s22 = ssub.s32 %s17, 1
      %s23 = ssub.s32 %s17, 2
      %s24 = sadd.s32 %s17, 1
      %s25 = ssub.s32 %s17, %s24
      %p26 = scmp.eq.s32.totalorder %s25, 0
      %s28 = sadd.s32 %s27, 1
      %s29 = scalar_select %p26, %s27, %s28
      %p32 = pneg %p26
      %p33 = scmp.eq.s32.totalorder %s17, 2
      %p34 = por %p32, %p33
      %p35 = scmp.ne.s32.totalorder %s27, %s30
      %p36 = scmp.eq.s32.totalorder %s17, 0
      %p37 = por %p35, %p36
      %p38 = scmp.ne.s32.totalorder %s27, %s30
      %p39 = scmp.eq.s32.totalorder %s22, 2
      %p40 = por %p38, %p39
      %p41 = scmp.ne.s32.totalorder %s30, %s31
      %p42 = scmp.eq.s32.totalorder %s22, 0
      %p43 = por %p41, %p42
      %p44 = scmp.ne.s32.totalorder %s30, %s31
      %p45 = scmp.eq.s32.totalorder %s23, 2
      %p46 = por %p44, %p45
      %p48 = scmp.ne.s32.totalorder %s31, %s47
      %p49 = scmp.eq.s32.totalorder %s23, 0
      %p50 = por %p48, %p49
      %s51 = ssub.s32 %s17, %s24
      %p52 = scmp.eq.s32.totalorder %s51, 0
      %s54 = sadd.s32 %s53, 1
      %s55 = scalar_select %p52, %s53, %s54
      %p58 = pneg %p52
      %p59 = scmp.eq.s32.totalorder %s17, 2
      %p60 = por %p58, %p59
      %p61 = scmp.ne.s32.totalorder %s53, %s56
      %p62 = scmp.eq.s32.totalorder %s17, 0
      %p63 = por %p61, %p62
      %p64 = scmp.ne.s32.totalorder %s53, %s56
      %p65 = scmp.eq.s32.totalorder %s22, 2
      %p66 = por %p64, %p65
      %p67 = scmp.ne.s32.totalorder %s56, %s57
      %p68 = scmp.eq.s32.totalorder %s22, 0
      %p69 = por %p67, %p68
      %p70 = scmp.ne.s32.totalorder %s56, %s57
      %p71 = scmp.eq.s32.totalorder %s23, 2
      %p72 = por %p70, %p71
      %p74 = scmp.ne.s32.totalorder %s57, %s73
      %p75 = scmp.eq.s32.totalorder %s23, 0
      %p76 = por %p74, %p75
      %s77 = ssub.s32 %s17, %s24
      %p78 = scmp.eq.s32.totalorder %s77, 0
      %s80 = sadd.s32 %s79, 1
      %s81 = scalar_select %p78, %s79, %s80
      %p84 = pneg %p78
      %p85 = scmp.eq.s32.totalorder %s17, 2
      %p86 = por %p84, %p85
      %p87 = scmp.ne.s32.totalorder %s79, %s82
      %p88 = scmp.eq.s32.totalorder %s17, 0
      %p89 = por %p87, %p88
      %p90 = scmp.ne.s32.totalorder %s79, %s82
      %p91 = scmp.eq.s32.totalorder %s22, 2
      %p92 = por %p90, %p91
      %p93 = scmp.ne.s32.totalorder %s82, %s83
      %p94 = scmp.eq.s32.totalorder %s22, 0
      %p95 = por %p93, %p94
      %p96 = scmp.ne.s32.totalorder %s82, %s83
      %p97 = scmp.eq.s32.totalorder %s23, 2
      %p98 = por %p96, %p97
      %p100 = scmp.ne.s32.totalorder %s83, %s99
      %p101 = scmp.eq.s32.totalorder %s23, 0
      %p102 = por %p100, %p101
      %p103 = scmp.le.s32.totalorder 1, %s17
      %p104 = scmp.lt.s32.totalorder %s17, 4
      %p105 = pnand %p103, %p104
      %p106 = pneg %p105
      // Predicated region
      $region9: #{tpu_custom_call.1} parent=5 // pred_check
        _
      $region10: #{tpu_custom_call.1} parent=5 // pred_check_branch
        %108 = sbr.rel (%p105) target = $region12
      $region11: #{tpu_custom_call.1} parent=5 // pred_region
        %s109 = ssub.s32 %s17, 1
      $region12: #{tpu_custom_call.1} parent=5 // pred_fallthru
        _
      %p110 = scmp.lt.s32.totalorder %s17, 3
      // Predicated region
      $region13: #{tpu_custom_call.1} parent=5 // pred_check
        %p111 = pneg %p110
      $region14: #{tpu_custom_call.1} parent=5 // pred_check_branch
        %113 = sbr.rel (%p111) target = $region16
      $region15: #{tpu_custom_call.1} parent=5 // pred_region
        // Predicated region
        $region17: #{tpu_custom_call.1} parent=15 // pred_check
          %p114 = pneg %p37
        $region18: #{tpu_custom_call.1} parent=15 // pred_check_branch
          %116 = sbr.rel (%p114) target = $region20
        $region19: #{tpu_custom_call.1} parent=15 // pred_region
          %s117 = sand.u32 %s27, 1
          %s118 = scalar_lea.sflag [#allocation3], %s117
          %s119 = sand.u32 %s27, 1
          %s120 = smul.addr %s119, 16
          %s121 = scalar_lea.vmem [#allocation2], %s120
          %s123 = ssub.s32 256, 256
          %124 = vsyncadd %s118, %s123
          %s125 = smul.addr %s17, 2
          %s126 = smul.addr %s125, 128
          %s127 = scalar_lea.hbm %s0, %s126
          %s129 = sshll.u32 %s121, 4
          %s130 = int_to_ptr.vmem [resolvable:$true] %s129
          %132 = dma.hbm_to_vmem [thread:$0]  %s127, 256, %s130, %s118
        $region20: #{tpu_custom_call.1} parent=15 // pred_fallthru
          _
        // Predicated region
        $region21: #{tpu_custom_call.1} parent=15 // pred_check
          %p133 = pneg %p63
        $region22: #{tpu_custom_call.1} parent=15 // pred_check_branch
          %135 = sbr.rel (%p133) target = $region24
        $region23: #{tpu_custom_call.1} parent=15 // pred_region
          %s136 = sand.u32 %s53, 1
          %s137 = scalar_lea.sflag [#allocation6], %s136
          %s138 = sand.u32 %s53, 1
          %s139 = smul.addr %s138, 32
          %s140 = scalar_lea.vmem [#allocation5], %s139
          %s142 = ssub.s32 512, 512
          %143 = vsyncadd %s137, %s142
          %s144 = smul.addr %s17, 2
          %s145 = smul.addr %s144, 128
          %s146 = scalar_lea.hbm %s1, %s145
          %s147 = sshll.u32 %s140, 4
          %s148 = int_to_ptr.vmem [resolvable:$true] %s147
          %153 = dma.hbm_to_vmem [thread:$0]  %s146, 512, %s148, %s137, 768, 256, 16
        $region24: #{tpu_custom_call.1} parent=15 // pred_fallthru
          _
      $region16: #{tpu_custom_call.1} parent=5 // pred_fallthru
        _
      %p154 = scmp.le.s32.totalorder 1, %s17
      %p155 = scmp.lt.s32.totalorder %s17, 4
      %p156 = pnand %p154, %p155
      %p157 = pneg %p156
      // Predicated region
      $region25: #{tpu_custom_call.1} parent=5 // pred_check
        _
      $region26: #{tpu_custom_call.1} parent=5 // pred_check_branch
        %159 = sbr.rel (%p156) target = $region28
      $region27: #{tpu_custom_call.1} parent=5 // pred_region
        %s160 = ssub.s32 %s17, 1
        %s161 = sand.u32 %s30, 1
        %s162 = scalar_lea.sflag [#allocation3], %s161
        %s163 = sand.u32 %s30, 1
        %s164 = smul.addr %s163, 16
        %s165 = scalar_lea.vmem [#allocation2], %s164
        // Predicated region
        $region29: #{tpu_custom_call.1} parent=27 // pred_check
          %p166 = pneg %p43
        $region30: #{tpu_custom_call.1} parent=27 // pred_check_branch
          %168 = sbr.rel (%p166) target = $region32
        $region31: #{tpu_custom_call.1} parent=27 // pred_region
          %169 = dma.done %s162, 256
        $region32: #{tpu_custom_call.1} parent=27 // pred_fallthru
          _
        %s170 = sand.u32 %s56, 1
        %s171 = scalar_lea.sflag [#allocation6], %s170
        %s172 = sand.u32 %s56, 1
        %s173 = smul.addr %s172, 32
        %s174 = scalar_lea.vmem [#allocation5], %s173
        // Predicated region
        $region33: #{tpu_custom_call.1} parent=27 // pred_check
          %p175 = pneg %p69
        $region34: #{tpu_custom_call.1} parent=27 // pred_check_branch
          %177 = sbr.rel (%p175) target = $region36
        $region35: #{tpu_custom_call.1} parent=27 // pred_region
          %178 = dma.done %s171, 512
        $region36: #{tpu_custom_call.1} parent=27 // pred_fallthru
          _
        %s179 = sand.u32 %s30, 1
        %s180 = scalar_lea.sflag [#allocation3], %s179
        %s181 = sand.u32 %s30, 1
        %s182 = smul.addr %s181, 16
        %s183 = scalar_lea.vmem [#allocation2], %s182
        %p184 = pneg %p43
        %p185 = pneg %p40
        %s186 = sand.u32 %s56, 1
        %s187 = scalar_lea.sflag [#allocation6], %s186
        %s188 = sand.u32 %s56, 1
        %s189 = smul.addr %s188, 32
        %s190 = scalar_lea.vmem [#allocation5], %s189
        %p191 = pneg %p69
        %p192 = pneg %p66
        %p193 = pneg %p95
        %p194 = pneg %p92
        %s195 = sand.u32 %s82, 1
        %s196 = scalar_lea.sflag [#allocation4], %s195
        %s197 = sand.u32 %s82, 1
        %s198 = smul.addr %s197, 32
        %s199 = scalar_lea.vmem [#allocation7], %s198
        %v200 = vld [vmem:[%s165] sm:$0xff]
        %v201 = vld [vmem:[%s165 + $0x8] sm:$0xff]
        %202 = vst [vmem:[%s199] sm:$0xff] %v200
        %203 = vst [vmem:[%s199 + $0x8] sm:$0xff] %v201
        %v204 = vld [vmem:[%s174] sm:$0xff]
        %v205 = vld [vmem:[%s174 + $0x8] sm:$0xff]
        %s206 = scalar_lea.vmem %s174, 16 [#allocation5]
        %v207 = vld [vmem:[%s206] sm:$0xff]
        %v208 = vld [vmem:[%s206 + $0x8] sm:$0xff]
        %v209 = vadd.f32 %v204, %v207
        %v210 = vadd.f32 %v205, %v208
        %v211 = vmul.f32 %v209, 0.5
        %v212 = vmul.f32 %v210, 0.5
        %213 = vst [vmem:[%s199 + $0x10] sm:$0xff] %v211
        %214 = vst [vmem:[%s199 + $0x18] sm:$0xff] %v212
        %s215 = sand.u32 %s82, 1
        %s216 = scalar_lea.sflag [#allocation4], %s215
        %s217 = sand.u32 %s82, 1
        %s218 = smul.addr %s217, 32
        %s219 = scalar_lea.vmem [#allocation7], %s218
        // Predicated region
        $region37: #{tpu_custom_call.1} parent=27 // pred_check
          %p220 = pneg %p92
        $region38: #{tpu_custom_call.1} parent=27 // pred_check_branch
          %222 = sbr.rel (%p220) target = $region40
        $region39: #{tpu_custom_call.1} parent=27 // pred_region
          %s224 = ssub.s32 512, 512
          %225 = vsyncadd %s216, %s224
          %s226 = smul.addr %s22, 4
          %s227 = smul.addr %s226, 128
          %s228 = scalar_lea.hbm %s2, %s227
          %s230 = sshll.u32 %s219, 4
          %s231 = int_to_ptr.vmem [resolvable:$true] %s230
          %233 = dma.vmem_to_hbm [thread:$0]  %s231, 512, %s228, %s216
        $region40: #{tpu_custom_call.1} parent=27 // pred_fallthru
          _
      $region28: #{tpu_custom_call.1} parent=5 // pred_fallthru
        _
      %p234 = scmp.le.s32.totalorder 2, %s17
      // Predicated region
      $region41: #{tpu_custom_call.1} parent=5 // pred_check
        %p235 = pneg %p234
      $region42: #{tpu_custom_call.1} parent=5 // pred_check_branch
        %237 = sbr.rel (%p235) target = $region44
      $region43: #{tpu_custom_call.1} parent=5 // pred_region
        %s238 = ssub.s32 %s17, 2
        // Predicated region
        $region45: #{tpu_custom_call.1} parent=43 // pred_check
          %p239 = pneg %p98
        $region46: #{tpu_custom_call.1} parent=43 // pred_check_branch
          %241 = sbr.rel (%p239) target = $region48
        $region47: #{tpu_custom_call.1} parent=43 // pred_region
          %s242 = sand.u32 %s83, 1
          %s243 = scalar_lea.sflag [#allocation4], %s242
          %s244 = sand.u32 %s83, 1
          %s245 = smul.addr %s244, 32
          %s246 = scalar_lea.vmem [#allocation7], %s245
          %247 = dma.done %s243, 512
        $region48: #{tpu_custom_call.1} parent=43 // pred_fallthru
          _
      $region44: #{tpu_custom_call.1} parent=5 // pred_fallthru
        _
    $region6: #{tpu_custom_call.1} parent=1 // loop_footer
      %s21 = sadd.s32 1, %s17
    $region7: #{tpu_custom_call.1} parent=1 // loop_footer_branch
      %16 = sbr.rel target = $region3
    $region8: #{tpu_custom_call.1} parent=1 // loop_exit
      _
    %248 = vsyncpa [#allocation3], 1
    %s249 = scalar_lea.sflag [#allocation3], 1
    %250 = vsyncpa %s249, 1
    %251 = vsyncpa [#allocation6], 1
    %s252 = scalar_lea.sflag [#allocation6], 1
    %253 = vsyncpa %s252, 1
    %254 = vsyncpa [#allocation4], 1
    %s255 = scalar_lea.sflag [#allocation4], 1
    %256 = vsyncpa %s255, 1

</llo_original>
